<compile_context>
chip_gen: v5e
topology: v5e:2x2
jax: 0.10.0
libtpu: 0.0.40
codegen_flags: <defaults>
</compile_context>

<pallas_src>
import functools

import jax
import jax.numpy as jnp
from jax.experimental import pallas as pl
from jax.experimental.pallas import tpu as pltpu


def _round_up(n, m):
    return ((n + m - 1) // m) * m


# VMEM planning (v5e / v6e / v7x):
#   per-input pipeline buffer <= 8 MiB (Pallas double-buffers -> 16 MiB), plus
#   2 double-buffered (1,B,B) f32 out blocks and the (B,B) f32 accumulator,
#   all budgeted against _PIPELINE_BUDGET_BYTES.  The scoped-VMEM limit is set
#   explicitly to 48 MiB: above the 16 MiB (v5e) / 32 MiB (v6e, v7x) defaults
#   and safely under v7x's 64 MiB physical VMEM (v5e/v6e have 128 MiB).
_MAX_TILE_BYTES = 8 * 1024 * 1024
_PIPELINE_BUDGET_BYTES = 40 * 1024 * 1024
_VMEM_LIMIT_BYTES = 48 * 1024 * 1024


def _gram_kernel(x_ref, g_ref, acc_ref, *, d_total, td, nk_per_core, need_mask):
    # x_ref  : (B, td)   feature chunk, native dtype (f32 or bf16)
    # g_ref  : (1, B, B) per-core raw Gram output (f32)
    # acc_ref: (B, B)    f32 accumulator, persists across the reduction axis
    c = pl.program_id(0)          # "parallel" axis (megacore split on v7x)
    k = pl.program_id(1)          # "arbitrary" reduction axis (feature chunks)

    @pl.when(k == 0)
    def _():
        acc_ref[...] = jnp.zeros_like(acc_ref)

    x = x_ref[...]
    if need_mask:
        # Ragged last tile / padded grid steps: columns past `valid` hold
        # unspecified VMEM contents (no jnp.pad copy in HBM), so zero them
        # before the contraction.  valid <= 0 on fully-padded steps.
        u = c * nk_per_core + k                       # logical chunk index
        valid = d_total - u * td
        col = jax.lax.broadcasted_iota(jnp.int32, x.shape, 1)
        x = jnp.where(col < valid, x, jnp.zeros_like(x))

    # x @ x.T: deep (td-long) contraction on the MXU, f32 accumulation.
    acc_ref[...] += jax.lax.dot_general(
        x, x,
        dimension_numbers=(((1,), (1,)), ((), ())),
        preferred_element_type=jnp.float32,
    )

    @pl.when(k == nk_per_core - 1)
    def _():
        g_ref[0] = acc_ref[...]


def _gram(x, *, tile_cols=None):
    """x: (B, D) f32/bf16 -> x @ x.T as (B, B) f32, one streaming HBM pass."""
    B, D = x.shape
    itemsize = x.dtype.itemsize
    sublane = 8 * (4 // itemsize)                 # 8 for f32, 16 for bf16
    row_bytes = _round_up(B, sublane) * itemsize  # VMEM bytes per tile column set

    # Budget: 2 double-buffered (1,B,B) f32 out blocks + (B,B) f32 scratch;
    # the remainder is split across the two pipeline buffers of the input tile.
    # (The Gram approach targets loss-sized batches; B >~ 1500 would not fit.)
    gram_block_bytes = _round_up(B, 8) * _round_up(B, 128) * 4
    fixed_bytes = 3 * gram_block_bytes
    per_buf = min(_MAX_TILE_BYTES,
                  max(0, _PIPELINE_BUDGET_BYTES - fixed_bytes) // 2)

    if tile_cols is None:
        td = max(128, per_buf // row_bytes // 128 * 128)   # lane-aligned
        td = min(td, _round_up(D, 128))
    else:
        assert tile_cols % 128 == 0
        td = tile_cols

    nk = (D + td - 1) // td                  # feature chunks (no jnp.pad copy)
    ncores = 2 if nk >= 2 else 1             # keep v7x megacore via 2-way split
    nk_per_core = (nk + ncores - 1) // ncores
    need_mask = (D % td != 0) or (ncores * nk_per_core != nk)

    kernel = functools.partial(
        _gram_kernel, d_total=D, td=td, nk_per_core=nk_per_core,
        need_mask=need_mask)

    per_core = pl.pallas_call(
        kernel,
        out_shape=jax.ShapeDtypeStruct((ncores, B, B), jnp.float32),
        grid_spec=pltpu.PrefetchScalarGridSpec(
            num_scalar_prefetch=0,
            grid=(ncores, nk_per_core),
            in_specs=[pl.BlockSpec(
                (B, td),
                # Clamp padded steps onto the last real chunk; their data is
                # fully masked in-kernel, so correctness never depends on it.
                lambda c, k: (0, jnp.minimum(c * nk_per_core + k, nk - 1)))],
            out_specs=pl.BlockSpec((1, B, B), lambda c, k: (c, 0, 0)),
            scratch_shapes=[pltpu.VMEM((B, B), jnp.float32)],
        ),
        compiler_params=pltpu.CompilerParams(
            dimension_semantics=("parallel", "arbitrary"),
            vmem_limit_bytes=_VMEM_LIMIT_BYTES,
        ),
    )(x)
    # O(ncores * B^2) glue; the old nk-long partials axis is gone.
    return jnp.sum(per_core, axis=0)


def _center_normalize_gram(G):
    """Gram of the centered + row-L2-normalized data, from the raw G = x x^T.

    Centering over the batch is x -> C x with C = I - 11^T/B, so the centered
    Gram is the double-centered Gc = C G C; row norms of the centered data are
    sqrt(diag(Gc)), and rows/cols are rescaled by 1/(norm + 1e-6), matching the
    PyTorch module.  NOTE: double-centering G in f32 can lose precision versus
    centering x first when activations carry a large common offset; forward
    values match the reference on the test data.
    """
    row_mean = jnp.mean(G, axis=1, keepdims=True)
    col_mean = jnp.mean(G, axis=0, keepdims=True)
    tot_mean = jnp.mean(G)
    Gc = G - row_mean - col_mean + tot_mean
    norms = jnp.sqrt(jnp.maximum(jnp.diagonal(Gc), 0.0))
    s = 1.0 / (norms + 1e-6)
    return Gc * s[:, None] * s[None, :]


def diff_loss(input1, input2, *, tile_cols=None):
    """JAX/Pallas equivalent of DiffLoss.forward (forward-pass semantics)."""
    # TODO(synk): PyTorch detaches the row norm before dividing; JAX autodiff of
    # this graph would also differentiate through the norm (forward matches).
    B = input1.shape[0]
    x1 = input1.reshape(B, -1)
    x2 = input2.reshape(B, -1)

    # Stream in the native dtype (bf16 stays bf16 -> half the HBM traffic of an
    # f32 upcast); anything the MXU does not take natively is upcast once.
    def _prep(x):
        return x if x.dtype in (jnp.float32, jnp.bfloat16) else x.astype(jnp.float32)

    x1 = _prep(x1)
    x2 = _prep(x2)
    D1, D2 = x1.shape[1], x2.shape[1]

    # TODO(synk): when D1 == D2 both Grams (and the O(B^2) epilogue) could be
    # fused into a single pallas_call to shave one launch for tiny shapes.
    G1 = _gram(x1, tile_cols=tile_cols)     # one HBM pass over x1
    G2 = _gram(x2, tile_cols=tile_cols)     # one HBM pass over x2
    Gn1 = _center_normalize_gram(G1)
    Gn2 = _center_normalize_gram(G2)

    # mean((x1n^T @ x2n)^2) = sum(Gn1 * Gn2) / (D1 * D2)   (trace identity)
    return jnp.sum(Gn1 * Gn2) / jnp.float32(D1 * D2)


def _reference(input1, input2):
    """Pure-JAX reference implementing the PyTorch module directly."""
    B = input1.shape[0]
    x1 = input1.reshape(B, -1).astype(jnp.float32)
    x2 = input2.reshape(B, -1).astype(jnp.float32)
    x1 = x1 - jnp.mean(x1, axis=0, keepdims=True)
    x2 = x2 - jnp.mean(x2, axis=0, keepdims=True)
    x1 = x1 / (jnp.linalg.norm(x1, axis=1, keepdims=True) + 1e-6)
    x2 = x2 / (jnp.linalg.norm(x2, axis=1, keepdims=True) + 1e-6)
    return jnp.mean((x1.T @ x2) ** 2)


if __name__ == "__main__":
    key = jax.random.PRNGKey(0)
    k1, k2 = jax.random.split(key)

    # NCHW-style inputs, flattened inside diff_loss: (4, 4, 16, 16) -> (4, 1024)
    input1 = jax.random.normal(k1, (4, 4, 16, 16), dtype=jnp.float32)
    input2 = jax.random.normal(k2, (4, 4, 16, 16), dtype=jnp.float32)

    out = jax.block_until_ready(diff_loss(input1, input2))
    ref = jax.block_until_ready(_reference(input1, input2))
    assert out.shape == (), f"expected scalar, got {out.shape}"
    assert jnp.allclose(out, ref, rtol=1e-4, atol=1e-8), (out, ref)

    # Feature dim not a multiple of 128 (D = 300): ragged tile masked in-kernel,
    # no jnp.pad HBM copy.
    i3 = jax.random.normal(k1, (4, 3, 10, 10), dtype=jnp.float32)
    i4 = jax.random.normal(k2, (4, 3, 10, 10), dtype=jnp.float32)
    out2 = jax.block_until_ready(diff_loss(i3, i4))
    ref2 = jax.block_until_ready(_reference(i3, i4))
    assert jnp.allclose(out2, ref2, rtol=1e-4, atol=1e-8), (out2, ref2)

    # Force small tiles: exercises the multi-chunk accumulator, the 2-way
    # "parallel" core split, the clamped padded grid step and the ragged mask.
    out3 = jax.block_until_ready(diff_loss(i3, i4, tile_cols=128))
    assert jnp.allclose(out3, ref2, rtol=1e-4, atol=1e-8), (out3, ref2)

    # bf16 inputs are streamed in bf16 (native MXU operand, half the HBM bytes).
    b1 = input1.astype(jnp.bfloat16)
    b2 = input2.astype(jnp.bfloat16)
    out4 = jax.block_until_ready(diff_loss(b1, b2))
    ref4 = jax.block_until_ready(_reference(b1, b2))
    assert jnp.allclose(out4, ref4, rtol=5e-3, atol=1e-7), (out4, ref4)

    print("KERNEL_OK")
</pallas_src>

<mosaic_0001>
module attributes {stable_mosaic.version = 11 : i64} {
  func.func @_gram_kernel(%arg0: i32, %arg1: i32, %arg2: memref<4x1024xf32, #tpu.memory_space<vmem>>, %arg3: memref<1x4x4xf32, #tpu.memory_space<vmem>>, %arg4: memref<4x4xf32, #tpu.memory_space<vmem>>) attributes {dimension_semantics = [#tpu.dimension_semantics<parallel>, #tpu.dimension_semantics<arbitrary>], iteration_bounds = array<i64: 1, 1>, scalar_prefetch = 0 : i64, scratch_operands = 1 : i64, tpu.core_type = #tpu.core_type<tc>, window_params = [{transform_indices = @transform_0, window_bounds = array<i64: 4, 1024>}, {transform_indices = @transform_1, window_bounds = array<i64: 1, 4, 4>}]} {
    %c0_i32 = arith.constant 0 : i32
    %0 = arith.cmpi eq, %arg1, %c0_i32 : i32
    %1 = arith.extui %0 : i1 to i32
    %c0_i32_0 = arith.constant 0 : i32
    %2 = arith.cmpi ne, %1, %c0_i32_0 : i32
    scf.if %2 {
      %cst_8 = arith.constant 0.000000e+00 : f32
      %11 = vector.broadcast %cst_8 : f32 to vector<4x4xf32>
      %c0_9 = arith.constant 0 : index
      %c0_10 = arith.constant 0 : index
      %12 = vector.load %arg4[%c0_9, %c0_10] : memref<4x4xf32, #tpu.memory_space<vmem>>, vector<4x4xf32>
      tpu.vector_store %arg4[%c0_9, %c0_10], %11 {strides = array<i32>} : memref<4x4xf32, #tpu.memory_space<vmem>>, vector<4x4xf32>,
    } else {
    }
    %c0 = arith.constant 0 : index
    %c0_1 = arith.constant 0 : index
    %3 = vector.load %arg2[%c0, %c0_1] : memref<4x1024xf32, #tpu.memory_space<vmem>>, vector<4x1024xf32>
    %c0_2 = arith.constant 0 : index
    %c0_3 = arith.constant 0 : index
    %4 = vector.load %arg4[%c0_2, %c0_3] : memref<4x4xf32, #tpu.memory_space<vmem>>, vector<4x4xf32>
    %cst = arith.constant dense<0.000000e+00> : vector<4x4xf32>
    %5 = tpu.matmul %3, %3, %cst {dimension_numbers = #tpu.dot_dimension_numbers<[1], [1], [0], [0], [0, 0, 1, 0], [], []>} : vector<4x1024xf32>, vector<4x1024xf32>, vector<4x4xf32> -> vector<4x4xf32>
    %6 = arith.addf %4, %5 : vector<4x4xf32>
    %c0_4 = arith.constant 0 : index
    %c0_5 = arith.constant 0 : index
    %7 = vector.load %arg4[%c0_4, %c0_5] : memref<4x4xf32, #tpu.memory_space<vmem>>, vector<4x4xf32>
    tpu.vector_store %arg4[%c0_4, %c0_5], %6 {strides = array<i32>} : memref<4x4xf32, #tpu.memory_space<vmem>>, vector<4x4xf32>,
    %c0_i32_6 = arith.constant 0 : i32
    %8 = arith.cmpi eq, %arg1, %c0_i32_6 : i32
    %9 = arith.extui %8 : i1 to i32
    %c0_i32_7 = arith.constant 0 : i32
    %10 = arith.cmpi ne, %9, %c0_i32_7 : i32
    scf.if %10 {
      %c0_8 = arith.constant 0 : index
      %c0_9 = arith.constant 0 : index
      %11 = vector.load %arg4[%c0_8, %c0_9] : memref<4x4xf32, #tpu.memory_space<vmem>>, vector<4x4xf32>
      %c0_10 = arith.constant 0 : index
      %c0_11 = arith.constant 0 : index
      %c0_12 = arith.constant 0 : index
      %12 = vector.load %arg3[%c0_10, %c0_11, %c0_12] : memref<1x4x4xf32, #tpu.memory_space<vmem>>, vector<1x4x4xf32>
      %13 = vector.shape_cast %12 : vector<1x4x4xf32> to vector<4x4xf32>
      %14 = vector.shape_cast %11 : vector<4x4xf32> to vector<1x4x4xf32>
      tpu.vector_store %arg3[%c0_10, %c0_11, %c0_12], %14 {strides = array<i32>} : memref<1x4x4xf32, #tpu.memory_space<vmem>>, vector<1x4x4xf32>,
    } else {
    }
    return
  }
  func.func @transform_0(%arg0: i32, %arg1: i32) -> (i32, i32) {
    %c1_i32 = arith.constant 1 : i32
    %0 = arith.muli %arg0, %c1_i32 : i32
    %1 = arith.addi %0, %arg1 : i32
    %c0_i32 = arith.constant 0 : i32
    %2 = arith.minsi %1, %c0_i32 : i32
    %c0_i32_0 = arith.constant 0 : i32
    %c0_i32_1 = arith.constant 0 : i32
    return %c0_i32_0, %2 : i32, i32
  }
  func.func @transform_1(%arg0: i32, %arg1: i32) -> (i32, i32, i32) {
    %c0_i32 = arith.constant 0 : i32
    %c0_i32_0 = arith.constant 0 : i32
    %c0_i32_1 = arith.constant 0 : i32
    return %arg0, %c0_i32, %c0_i32_0 : i32, i32, i32
  }
}

</mosaic_0001>

<llo_original>
// kernel: tpu_custom_call.1
$region0: #{tpu_custom_call.1}
  #allocation0 [shape = 'u32[]', space=smem, size = 0x4, offset = 0x4, fixed_abs, tag = 'smem constant byte address 0x4 - core index']
  #allocation1 [shape = 'u32[72,128]{1,0:T(1,128)}', space=vmem, size = 0x9000, scoped, tag = 'internal scratch']
  #allocation2 [shape = 'f32[4,4]{1,0:T(4,128)}', space=vmem, size = 0x800, scoped, tag = 'scratch operand']
  %s0 = inlined_call_operand.hbm [shape: f32[4,1024], index: 0, kind: input, shape index: {}]
  %s1 = inlined_call_operand.hbm [shape: f32[1,4,4], index: 1, kind: output, shape index: {}]
  %s2 = sld [smem:[#allocation0]]
  $region26: #{tpu_custom_call.1} parent=0
    _
  %s4 = ssub.s32 1, %s2
  %s5 = scalar_select 0, %s4, %s2
  $region1: #{tpu_custom_call.1} parent=0
    #allocation3 [shape = 'u8[16384]{0}', space=vmem, size = 0x4000, scoped, tag = 'input window, operand 0, single buffered']
    #allocation4 [shape = 's32[1]{0}', space=sflag, size = 0x4, scoped, tag = 'scoped memory for tpu_custom_call.1']
    #allocation5 [shape = 's32[1]{0}', space=sflag, size = 0x4, scoped, tag = 'scoped memory for tpu_custom_call.1']
    #allocation6 [shape = 'u8[2048]{0}', space=vmem, size = 0x800, scoped, tag = 'output window, operand 0, single buffered']
    %6 = vsyncpa [#allocation4], 0
    %7 = vsyncpa [#allocation5], 0
    // Predicated region
    $region2: #{tpu_custom_call.1} parent=1 // pred_check
      _
    $region3: #{tpu_custom_call.1} parent=1 // pred_check_branch
      %9 = sbr.rel (0) target = $region5
    $region4: #{tpu_custom_call.1} parent=1 // pred_region
      %s10 = sadd.s32 0, 0
      %p11 = scmp.lt.s32.totalorder %s10, 0
      %s12 = scalar_select %p11, %s10, 0
      %s13 = smul.u32 8, %s12
      %15 = vsyncadd [#allocation4], 0
      %s16 = smul.addr %s13, 4
      %s17 = scalar_lea.hbm %s0, %s16
      %s19 = sshll.u32 %s17, 4
      %s20 = int_to_ptr.hbm [resolvable:$true] %s19
      %s21 = sshll.u32 [#allocation3], 4
      %s22 = int_to_ptr.vmem [resolvable:$true] %s21
      %24 = dma.hbm_to_vmem [thread:$0]  %s20, 512, %s22, [#allocation4]
    $region5: #{tpu_custom_call.1} parent=1 // pred_fallthru
      _
    // Predicated region
    $region6: #{tpu_custom_call.1} parent=1 // pred_check
      _
    $region7: #{tpu_custom_call.1} parent=1 // pred_check_branch
      %26 = sbr.rel (0) target = $region9
    $region8: #{tpu_custom_call.1} parent=1 // pred_region
      %28 = dma.done [#allocation4], 512
    $region9: #{tpu_custom_call.1} parent=1 // pred_fallthru
      _
    %s29 = sadd.s32 0, 0
    %p30 = scmp.lt.s32.totalorder %s29, 0
    %s31 = scalar_select %p30, %s29, 0
    %s32 = smul.u32 8, %s31
    %p33 = scmp.eq.s32.totalorder 0, 0
    // Predicated region
    $region10: #{tpu_custom_call.1} parent=1 // pred_check
      %p34 = pneg %p33
    $region11: #{tpu_custom_call.1} parent=1 // pred_check_branch
      %36 = sbr.rel (%p34) target = $region13
    $region12: #{tpu_custom_call.1} parent=1 // pred_region
      %vm37 = vcmask 27648
      %38 = vst.msk [vmem:[#allocation2] sm:$0xf] %vm37, 0.0
    $region13: #{tpu_custom_call.1} parent=1 // pred_fallthru
      _
    %v39 = vld [vmem:[#allocation3] sm:$0xff]
    %v40 = vld [vmem:[#allocation3 + $0x8] sm:$0xff]
    %v41 = vld [vmem:[#allocation3 + $0x10] sm:$0xff]
    %v42 = vld [vmem:[#allocation3 + $0x18] sm:$0xff]
    %v43 = vld [vmem:[#allocation2] sm:$0xf]
    %48 = vst [vmem:[#allocation1] ss:$2 sm:$0xff] %v39
    %s49 = scalar_lea.vmem [#allocation1], 16
    %50 = vst [vmem:[%s49] ss:$2 sm:$0xff] %v40
    %s51 = scalar_lea.vmem [#allocation1], 32
    %52 = vst [vmem:[%s51] ss:$2 sm:$0xff] %v41
    %s53 = scalar_lea.vmem [#allocation1], 48
    %54 = vst [vmem:[%s53] ss:$2 sm:$0xff] %v42
    %v55 = vld.sshfl [vmem:[#allocation1] sm:$0xff pattern:$0x75316420]
    %v56 = vld.sshfl [vmem:[#allocation1 + $0x8] sm:$0xff pattern:$0x75316420]
    %v57 = vld.sshfl [vmem:[#allocation1 + $0x10] sm:$0xff pattern:$0x75316420]
    %v58 = vld.sshfl [vmem:[#allocation1 + $0x18] sm:$0xff pattern:$0x75316420]
    %v59 = vld.sshfl [vmem:[#allocation1 + $0x20] sm:$0xff pattern:$0x75316420]
    %v60 = vld.sshfl [vmem:[#allocation1 + $0x28] sm:$0xff pattern:$0x75316420]
    %v61 = vld.sshfl [vmem:[#allocation1 + $0x30] sm:$0xff pattern:$0x75316420]
    %v62 = vld.sshfl [vmem:[#allocation1 + $0x38] sm:$0xff pattern:$0x75316420]
    %71 = vst [vmem:[#allocation1] ss:$2 sm:$0xff] %v39
    %s72 = scalar_lea.vmem [#allocation1], 16
    %73 = vst [vmem:[%s72] ss:$2 sm:$0xff] %v40
    %s74 = scalar_lea.vmem [#allocation1], 32
    %75 = vst [vmem:[%s74] ss:$2 sm:$0xff] %v41
    %s76 = scalar_lea.vmem [#allocation1], 48
    %77 = vst [vmem:[%s76] ss:$2 sm:$0xff] %v42
    %v78 = vld.sshfl [vmem:[#allocation1] sm:$0xff pattern:$0x75316420]
    %v79 = vld.sshfl [vmem:[#allocation1 + $0x8] sm:$0xff pattern:$0x75316420]
    %v80 = vld.sshfl [vmem:[#allocation1 + $0x10] sm:$0xff pattern:$0x75316420]
    %v81 = vld.sshfl [vmem:[#allocation1 + $0x18] sm:$0xff pattern:$0x75316420]
    %v82 = vld.sshfl [vmem:[#allocation1 + $0x20] sm:$0xff pattern:$0x75316420]
    %v83 = vld.sshfl [vmem:[#allocation1 + $0x28] sm:$0xff pattern:$0x75316420]
    %v84 = vld.sshfl [vmem:[#allocation1 + $0x30] sm:$0xff pattern:$0x75316420]
    %v85 = vld.sshfl [vmem:[#allocation1 + $0x38] sm:$0xff pattern:$0x75316420]
    %94 = vmatpush.xpose.msra.mxu0 0.0
    %95 = vmatpush.xpose.msra.mxu0 0.0
    %96 = vmatpush.xpose.msra.mxu0 0.0
    %97 = vmatpush.xpose.msra.mxu0 0.0
    %98 = vmatpush.xpose.msra.mxu0 0.0
    %99 = vmatpush.xpose.msra.mxu0 0.0
    %100 = vmatpush.xpose.msra.mxu0 0.0
    %101 = vmatpush.xpose.msra.mxu0 0.0
    %102 = vmatpush.xpose.msra.mxu0 0.0
    %103 = vmatpush.xpose.msra.mxu0 0.0
    %104 = vmatpush.xpose.msra.mxu0 0.0
    %105 = vmatpush.xpose.msra.mxu0 0.0
    %106 = vmatpush.xpose.msra.mxu0 0.0
    %107 = vmatpush.xpose.msra.mxu0 0.0
    %108 = vmatpush.xpose.msra.mxu0 0.0
    %109 = vmatpush.xpose.msra.mxu0 %v78
    %110 = vmatmul.f32.gmra.mxu0 %v55
    %v111 = vpop.f32.mrf.mxu0
    %v112 = vadd.f32 0.0, %v111
    %113 = vdwg.mxu0
    %114 = vmatpush.xpose.msra.mxu0 0.0
    %115 = vmatpush.xpose.msra.mxu0 0.0
    %116 = vmatpush.xpose.msra.mxu0 0.0
    %117 = vmatpush.xpose.msra.mxu0 0.0
    %118 = vmatpush.xpose.msra.mxu0 0.0
    %119 = vmatpush.xpose.msra.mxu0 0.0
    %120 = vmatpush.xpose.msra.mxu0 0.0
    %121 = vmatpush.xpose.msra.mxu0 0.0
    %122 = vmatpush.xpose.msra.mxu0 0.0
    %123 = vmatpush.xpose.msra.mxu0 0.0
    %124 = vmatpush.xpose.msra.mxu0 0.0
    %125 = vmatpush.xpose.msra.mxu0 0.0
    %126 = vmatpush.xpose.msra.mxu0 0.0
    %127 = vmatpush.xpose.msra.mxu0 0.0
    %128 = vmatpush.xpose.msra.mxu0 0.0
    %129 = vmatpush.xpose.msra.mxu0 %v79
    %130 = vmatmul.f32.gmra.mxu0 %v56
    %v131 = vpop.f32.mrf.mxu0
    %v132 = vadd.f32 %v112, %v131
    %133 = vdwg.mxu0
    %134 = vmatpush.xpose.msra.mxu0 0.0
    %135 = vmatpush.xpose.msra.mxu0 0.0
    %136 = vmatpush.xpose.msra.mxu0 0.0
    %137 = vmatpush.xpose.msra.mxu0 0.0
    %138 = vmatpush.xpose.msra.mxu0 0.0
    %139 = vmatpush.xpose.msra.mxu0 0.0
    %140 = vmatpush.xpose.msra.mxu0 0.0
    %141 = vmatpush.xpose.msra.mxu0 0.0
    %142 = vmatpush.xpose.msra.mxu0 0.0
    %143 = vmatpush.xpose.msra.mxu0 0.0
    %144 = vmatpush.xpose.msra.mxu0 0.0
    %145 = vmatpush.xpose.msra.mxu0 0.0
    %146 = vmatpush.xpose.msra.mxu0 0.0
    %147 = vmatpush.xpose.msra.mxu0 0.0
    %148 = vmatpush.xpose.msra.mxu0 0.0
    %149 = vmatpush.xpose.msra.mxu0 %v80
    %150 = vmatmul.f32.gmra.mxu0 %v57
    %v151 = vpop.f32.mrf.mxu0
    %v152 = vadd.f32 %v132, %v151
    %153 = vdwg.mxu0
    %154 = vmatpush.xpose.msra.mxu0 0.0
    %155 = vmatpush.xpose.msra.mxu0 0.0
    %156 = vmatpush.xpose.msra.mxu0 0.0
    %157 = vmatpush.xpose.msra.mxu0 0.0
    %158 = vmatpush.xpose.msra.mxu0 0.0
    %159 = vmatpush.xpose.msra.mxu0 0.0
    %160 = vmatpush.xpose.msra.mxu0 0.0
    %161 = vmatpush.xpose.msra.mxu0 0.0
    %162 = vmatpush.xpose.msra.mxu0 0.0
    %163 = vmatpush.xpose.msra.mxu0 0.0
    %164 = vmatpush.xpose.msra.mxu0 0.0
    %165 = vmatpush.xpose.msra.mxu0 0.0
    %166 = vmatpush.xpose.msra.mxu0 0.0
    %167 = vmatpush.xpose.msra.mxu0 0.0
    %168 = vmatpush.xpose.msra.mxu0 0.0
    %169 = vmatpush.xpose.msra.mxu0 %v81
    %170 = vmatmul.f32.gmra.mxu0 %v58
    %v171 = vpop.f32.mrf.mxu0
    %v172 = vadd.f32 %v152, %v171
    %173 = vdwg.mxu0
    %174 = vmatpush.xpose.msra.mxu0 0.0
    %175 = vmatpush.xpose.msra.mxu0 0.0
    %176 = vmatpush.xpose.msra.mxu0 0.0
    %177 = vmatpush.xpose.msra.mxu0 0.0
    %178 = vmatpush.xpose.msra.mxu0 0.0
    %179 = vmatpush.xpose.msra.mxu0 0.0
    %180 = vmatpush.xpose.msra.mxu0 0.0
    %181 = vmatpush.xpose.msra.mxu0 0.0
    %182 = vmatpush.xpose.msra.mxu0 0.0
    %183 = vmatpush.xpose.msra.mxu0 0.0
    %184 = vmatpush.xpose.msra.mxu0 0.0
    %185 = vmatpush.xpose.msra.mxu0 0.0
    %186 = vmatpush.xpose.msra.mxu0 0.0
    %187 = vmatpush.xpose.msra.mxu0 0.0
    %188 = vmatpush.xpose.msra.mxu0 0.0
    %189 = vmatpush.xpose.msra.mxu0 %v82
    %190 = vmatmul.f32.gmra.mxu0 %v59
    %v191 = vpop.f32.mrf.mxu0
    %v192 = vadd.f32 %v172, %v191
    %193 = vdwg.mxu0
    %194 = vmatpush.xpose.msra.mxu0 0.0
    %195 = vmatpush.xpose.msra.mxu0 0.0
    %196 = vmatpush.xpose.msra.mxu0 0.0
    %197 = vmatpush.xpose.msra.mxu0 0.0
    %198 = vmatpush.xpose.msra.mxu0 0.0
    %199 = vmatpush.xpose.msra.mxu0 0.0
    %200 = vmatpush.xpose.msra.mxu0 0.0
    %201 = vmatpush.xpose.msra.mxu0 0.0
    %202 = vmatpush.xpose.msra.mxu0 0.0
    %203 = vmatpush.xpose.msra.mxu0 0.0
    %204 = vmatpush.xpose.msra.mxu0 0.0
    %205 = vmatpush.xpose.msra.mxu0 0.0
    %206 = vmatpush.xpose.msra.mxu0 0.0
    %207 = vmatpush.xpose.msra.mxu0 0.0
    %208 = vmatpush.xpose.msra.mxu0 0.0
    %209 = vmatpush.xpose.msra.mxu0 %v83
    %210 = vmatmul.f32.gmra.mxu0 %v60
    %v211 = vpop.f32.mrf.mxu0
    %v212 = vadd.f32 %v192, %v211
    %213 = vdwg.mxu0
    %214 = vmatpush.xpose.msra.mxu0 0.0
    %215 = vmatpush.xpose.msra.mxu0 0.0
    %216 = vmatpush.xpose.msra.mxu0 0.0
    %217 = vmatpush.xpose.msra.mxu0 0.0
    %218 = vmatpush.xpose.msra.mxu0 0.0
    %219 = vmatpush.xpose.msra.mxu0 0.0
    %220 = vmatpush.xpose.msra.mxu0 0.0
    %221 = vmatpush.xpose.msra.mxu0 0.0
    %222 = vmatpush.xpose.msra.mxu0 0.0
    %223 = vmatpush.xpose.msra.mxu0 0.0
    %224 = vmatpush.xpose.msra.mxu0 0.0
    %225 = vmatpush.xpose.msra.mxu0 0.0
    %226 = vmatpush.xpose.msra.mxu0 0.0
    %227 = vmatpush.xpose.msra.mxu0 0.0
    %228 = vmatpush.xpose.msra.mxu0 0.0
    %229 = vmatpush.xpose.msra.mxu0 %v84
    %230 = vmatmul.f32.gmra.mxu0 %v61
    %v231 = vpop.f32.mrf.mxu0
    %v232 = vadd.f32 %v212, %v231
    %233 = vdwg.mxu0
    %234 = vmatpush.xpose.msra.mxu0 0.0
    %235 = vmatpush.xpose.msra.mxu0 0.0
    %236 = vmatpush.xpose.msra.mxu0 0.0
    %237 = vmatpush.xpose.msra.mxu0 0.0
    %238 = vmatpush.xpose.msra.mxu0 0.0
    %239 = vmatpush.xpose.msra.mxu0 0.0
    %240 = vmatpush.xpose.msra.mxu0 0.0
    %241 = vmatpush.xpose.msra.mxu0 0.0
    %242 = vmatpush.xpose.msra.mxu0 0.0
    %243 = vmatpush.xpose.msra.mxu0 0.0
    %244 = vmatpush.xpose.msra.mxu0 0.0
    %245 = vmatpush.xpose.msra.mxu0 0.0
    %246 = vmatpush.xpose.msra.mxu0 0.0
    %247 = vmatpush.xpose.msra.mxu0 0.0
    %248 = vmatpush.xpose.msra.mxu0 0.0
    %249 = vmatpush.xpose.msra.mxu0 %v85
    %250 = vmatmul.f32.gmra.mxu0 %v62
    %v251 = vpop.f32.mrf.mxu0
    %v252 = vadd.f32 %v232, %v251
    %253 = vdwg.mxu0
    %v254 = vadd.f32 %v43, %v252
    %vm255 = vcmask 27648
    %256 = vst.msk [vmem:[#allocation2] sm:$0xf] %vm255, %v254
    // Predicated region
    $region14: #{tpu_custom_call.1} parent=1 // pred_check
      %p257 = pneg %p33
    $region15: #{tpu_custom_call.1} parent=1 // pred_check_branch
      %259 = sbr.rel (%p257) target = $region17
    $region16: #{tpu_custom_call.1} parent=1 // pred_region
      %v260 = vld [vmem:[#allocation2] sm:$0xf]
      %261 = vst.msk [vmem:[#allocation6] sm:$0xf] %vm255, %v260
    $region17: #{tpu_custom_call.1} parent=1 // pred_fallthru
      _
    // Predicated region
    $region18: #{tpu_custom_call.1} parent=1 // pred_check
      _
    $region19: #{tpu_custom_call.1} parent=1 // pred_check_branch
      %263 = sbr.rel (0) target = $region21
    $region20: #{tpu_custom_call.1} parent=1 // pred_region
      %265 = vsyncadd [#allocation5], 0
      %s267 = sshll.u32 [#allocation6], 4
      %s268 = int_to_ptr.vmem [resolvable:$true] %s267
      %s269 = sshll.u32 %s1, 4
      %s270 = int_to_ptr.hbm [resolvable:$true] %s269
      %272 = dma.vmem_to_hbm [thread:$0]  %s268, 64, %s270, [#allocation5]
    $region21: #{tpu_custom_call.1} parent=1 // pred_fallthru
      _
    // Predicated region
    $region22: #{tpu_custom_call.1} parent=1 // pred_check
      _
    $region23: #{tpu_custom_call.1} parent=1 // pred_check_branch
      %274 = sbr.rel (0) target = $region25
    $region24: #{tpu_custom_call.1} parent=1 // pred_region
      %276 = dma.done [#allocation5], 64
    $region25: #{tpu_custom_call.1} parent=1 // pred_fallthru
      _
    %277 = vsyncpa [#allocation4], 1
    %278 = vsyncpa [#allocation5], 1

</llo_original>
